<compile_context>
chip_gen: v5e
topology: v5e:2x2
jax: 0.10.0
libtpu: 0.0.40
codegen_flags: <defaults>
</compile_context>

<pallas_src>
import jax
import jax.numpy as jnp
from jax.experimental import pallas as pl
from jax.experimental.pallas import tpu as pltpu


# --------------------------------------------------------------------------
# Kernels
# --------------------------------------------------------------------------
def _sigmoid(y):
    # Stable sigmoid via tanh: a single EUP op, no exp overflow for large |y|.
    return 0.5 * (1.0 + jnp.tanh(0.5 * y))


def ffn_kernel_single_k(x_ref, w_ref, b_ref, o_ref):
    """K fits in one block: no reduction axis, no accumulator scratch."""
    y = jnp.dot(x_ref[...].astype(jnp.bfloat16), w_ref[...],
                preferred_element_type=jnp.float32) + b_ref[...]
    o_ref[...] = _sigmoid(y).astype(o_ref.dtype)


def ffn_kernel_multi_k(x_ref, w_ref, b_ref, o_ref, acc_ref):
    """(M, N, K) grid; K is the last ('arbitrary') axis and accumulates."""
    k = pl.program_id(2)

    @pl.when(k == 0)
    def _init():
        acc_ref[...] = jnp.zeros_like(acc_ref)

    acc_ref[...] += jnp.dot(x_ref[...].astype(jnp.bfloat16), w_ref[...],
                            preferred_element_type=jnp.float32)

    @pl.when(k == pl.num_programs(2) - 1)
    def _finalize():
        y = acc_ref[...] + b_ref[...]
        o_ref[...] = _sigmoid(y).astype(o_ref.dtype)


# --------------------------------------------------------------------------
# Tiling helpers
# --------------------------------------------------------------------------
def _round_up(x, mult):
    return ((x + mult - 1) // mult) * mult


def _divisor_tile(dim, candidates):
    for c in candidates:
        if c <= dim and dim % c == 0:
            return c
    return dim  # full extent is always a legal block size


def _vmem_budget_bytes():
    cap = 64 * 1024 * 1024  # conservative default (v7x per-TC physical VMEM)
    try:
        info = pltpu.get_tpu_info()
        cap = int(getattr(info, "vmem_capacity_bytes", cap) or cap)
    except Exception:
        pass
    # Generous headroom for Mosaic's own scratch + pipelining bookkeeping:
    # ~56 MiB on 128 MiB chips (v5e/v6e), ~28 MiB on 64 MiB v7x.
    budget = min(int(0.45 * cap), 56 * 1024 * 1024)
    return cap, budget


def _choose_tiles(m, d_ff, d_model, x_itemsize, budget):
    # Lane-dense candidates (multiples of 128/256); fall back to full extent.
    tn = _divisor_tile(d_ff, (2048, 1536, 1024, 512, 256, 128))
    tk = _divisor_tile(d_model, (2048, 1024, 512, 256, 128))
    tm = next((t for t in (8, 16, 32, 64, 128, 256, 512, 1024, 2048)
               if t >= m), 2048)

    def footprint(tm_, tn_, tk_):
        single_k = (tk_ == d_model)
        need = 2 * (tm_ * tk_ * x_itemsize   # x tile (double buffered)
                    + tk_ * tn_ * 2          # bf16 weight tile
                    + tm_ * tn_ * 2          # bf16 output tile
                    + tn_ * 4)               # f32 bias tile
        if not single_k:
            need += tm_ * tn_ * 4            # resident f32 accumulator
        return need

    # Shrink greedily until the double-buffered footprint fits the budget.
    while footprint(tm, tn, tk) > budget:
        if tm > 256:
            tm //= 2
        elif tn > 256 and (tn // 2) % 128 == 0:
            tn //= 2
        elif tk > 256 and (tk // 2) % 128 == 0:
            tk //= 2
        elif tm > 8:
            tm //= 2
        else:
            break

    # v7x megacore balance: both TensorCores need parallel work.  Only split
    # when the halved tile stays lane/sublane aligned (no-op on tiny shapes;
    # harmless on single-TC v5e/v6e).
    if (_round_up(m, tm) // tm) * (d_ff // tn) < 2:
        if tn >= 256 and (tn // 2) % 128 == 0:
            tn //= 2
        elif tm >= 256:
            tm //= 2

    return tm, tn, tk, footprint(tm, tn, tk)


# --------------------------------------------------------------------------
# Forward
# --------------------------------------------------------------------------
def ffn_forward(x, w_t_bf16, bias):
    """dropout(sigmoid(x @ w_t + bias)) with eval-mode dropout (identity).

    x        : (..., d_model), any float dtype (tile-cast to bf16 in-kernel)
    w_t_bf16 : (d_model, d_ff), pre-transposed + pre-cast to bf16 ONCE outside
               the hot path (PyTorch stores the weight as (d_ff, d_model) f32)
    bias     : (d_ff,)
    Returns  : (..., d_ff) bf16 (halves HBM writeback vs f32).
    """
    d_model, d_ff = w_t_bf16.shape
    lead = x.shape[:-1]
    m = 1
    for s in lead:
        m *= s

    x2d = x.reshape(m, d_model)
    w2d = w_t_bf16.astype(jnp.bfloat16)      # no-op convert if already bf16
    b2d = bias.reshape(1, d_ff).astype(jnp.float32)

    cap, budget = _vmem_budget_bytes()
    tm, tn, tk, need = _choose_tiles(m, d_ff, d_model, x2d.dtype.itemsize,
                                     budget)

    # Pad rows to a tile multiple (rows are independent); slice back at the end.
    m_pad = _round_up(m, tm)
    if m_pad != m:
        x2d = jnp.pad(x2d, ((0, m_pad - m), (0, 0)))

    single_k = (tk == d_model)
    out_dtype = jnp.bfloat16

    cost = pl.CostEstimate(
        flops=2 * m_pad * d_model * d_ff,
        transcendentals=m_pad * d_ff,
        bytes_accessed=(m_pad * d_model * x2d.dtype.itemsize
                        + d_model * d_ff * 2 + d_ff * 4 + m_pad * d_ff * 2),
    )
    vmem_limit = int(min(max(int(1.5 * need), 16 * 1024 * 1024),
                         cap - (4 << 20)))

    if single_k:
        grid = (m_pad // tm, d_ff // tn)
        grid_spec = pltpu.PrefetchScalarGridSpec(
            num_scalar_prefetch=0,
            grid=grid,
            in_specs=[
                pl.BlockSpec((tm, tk), lambda i, j: (i, 0)),
                pl.BlockSpec((tk, tn), lambda i, j: (0, j)),
                pl.BlockSpec((1, tn), lambda i, j: (0, j)),
            ],
            out_specs=pl.BlockSpec((tm, tn), lambda i, j: (i, j)),
        )
        kernel = ffn_kernel_single_k
        semantics = ("parallel", "parallel")
    else:
        grid = (m_pad // tm, d_ff // tn, d_model // tk)
        grid_spec = pltpu.PrefetchScalarGridSpec(
            num_scalar_prefetch=0,
            grid=grid,
            in_specs=[
                pl.BlockSpec((tm, tk), lambda i, j, k: (i, k)),
                pl.BlockSpec((tk, tn), lambda i, j, k: (k, j)),
                pl.BlockSpec((1, tn), lambda i, j, k: (0, j)),
            ],
            out_specs=pl.BlockSpec((tm, tn), lambda i, j, k: (i, j)),
            scratch_shapes=[pltpu.VMEM((tm, tn), jnp.float32)],
        )
        kernel = ffn_kernel_multi_k
        semantics = ("parallel", "parallel", "arbitrary")

    out2d = pl.pallas_call(
        kernel,
        out_shape=jax.ShapeDtypeStruct((m_pad, d_ff), out_dtype),
        grid_spec=grid_spec,
        compiler_params=pltpu.CompilerParams(
            dimension_semantics=semantics,
            vmem_limit_bytes=vmem_limit),
        cost_estimate=cost,
    )(x2d, w2d, b2d)

    if m_pad != m:
        out2d = out2d[:m]

    # Dropout in eval mode == identity.
    return out2d.reshape(*lead, d_ff)


def init_ffn_params(key, d_model, d_ff):
    # Deterministic init mimicking nn.Linear: U(-1/sqrt(fan_in), 1/sqrt(fan_in)).
    k_w, k_b = jax.random.split(key)
    bound = 1.0 / (d_model ** 0.5)
    weight = jax.random.uniform(k_w, (d_ff, d_model), jnp.float32, -bound, bound)
    bias = jax.random.uniform(k_b, (d_ff,), jnp.float32, -bound, bound)
    return weight, bias


if __name__ == "__main__":
    key = jax.random.PRNGKey(0)
    k_x, k_p = jax.random.split(key)

    batch, seq, d_model, d_ff = 2, 8, 32, 64
    x = jax.random.normal(k_x, (batch, seq, d_model), jnp.float32)
    weight, bias = init_ffn_params(k_p, d_model, d_ff)

    # Pre-transpose + pre-cast to bf16 ONCE, outside the per-call hot path.
    w_t = jnp.asarray(weight.T, dtype=jnp.bfloat16)  # (d_model, d_ff)

    fwd = jax.jit(ffn_forward)
    out = jax.block_until_ready(fwd(x, w_t, bias))
    assert out.shape == (batch, seq, d_ff)
    assert out.dtype == jnp.bfloat16
    out_f32 = out.astype(jnp.float32)

    # Reference with bf16-rounded inputs (matches the MXU dtype path).
    x_bf = x.astype(jnp.bfloat16).astype(jnp.float32)
    w_bf = weight.T.astype(jnp.bfloat16).astype(jnp.float32)
    ref_bf16 = jax.nn.sigmoid(x_bf @ w_bf + bias)
    assert jnp.allclose(out_f32, ref_bf16, atol=8e-3, rtol=8e-3)

    # Full-precision PyTorch-equivalent reference (loosened for bf16 path).
    ref_f32 = jax.nn.sigmoid(x @ weight.T + bias)
    assert jnp.allclose(out_f32, ref_f32, atol=2e-2, rtol=2e-2)

    print("KERNEL_OK")
</pallas_src>

<mosaic_0001>
module attributes {stable_mosaic.version = 11 : i64} {
  func.func @ffn_kernel_single_k(%arg0: i32, %arg1: i32, %arg2: memref<16x32xf32, #tpu.memory_space<vmem>>, %arg3: memref<32x64xbf16, #tpu.memory_space<vmem>>, %arg4: memref<1x64xf32, #tpu.memory_space<vmem>>, %arg5: memref<16x64xbf16, #tpu.memory_space<vmem>>) attributes {dimension_semantics = [#tpu.dimension_semantics<parallel>, #tpu.dimension_semantics<parallel>], iteration_bounds = array<i64: 1, 1>, scalar_prefetch = 0 : i64, scratch_operands = 0 : i64, tpu.core_type = #tpu.core_type<tc>, window_params = [{transform_indices = @transform_0, window_bounds = array<i64: 16, 32>}, {transform_indices = @transform_1, window_bounds = array<i64: 32, 64>}, {transform_indices = @transform_2, window_bounds = array<i64: 1, 64>}, {transform_indices = @transform_3, window_bounds = array<i64: 16, 64>}]} {
    %c0 = arith.constant 0 : index
    %c0_0 = arith.constant 0 : index
    %0 = vector.load %arg2[%c0, %c0_0] : memref<16x32xf32, #tpu.memory_space<vmem>>, vector<16x32xf32>
    %1 = arith.truncf %0 : vector<16x32xf32> to vector<16x32xbf16>
    %c0_1 = arith.constant 0 : index
    %c0_2 = arith.constant 0 : index
    %2 = vector.load %arg3[%c0_1, %c0_2] : memref<32x64xbf16, #tpu.memory_space<vmem>>, vector<32x64xbf16>
    %cst = arith.constant dense<0.000000e+00> : vector<16x64xf32>
    %3 = tpu.matmul %1, %2, %cst {dimension_numbers = #tpu.dot_dimension_numbers<[1], [0], [0], [1], [0, 0, 1, 1], [], []>} : vector<16x32xbf16>, vector<32x64xbf16>, vector<16x64xf32> -> vector<16x64xf32>
    %c0_3 = arith.constant 0 : index
    %c0_4 = arith.constant 0 : index
    %4 = vector.load %arg4[%c0_3, %c0_4] : memref<1x64xf32, #tpu.memory_space<vmem>>, vector<1x64xf32>
    %5 = vector.broadcast %4 : vector<1x64xf32> to vector<16x64xf32>
    %6 = arith.addf %3, %5 : vector<16x64xf32>
    %cst_5 = arith.constant 5.000000e-01 : f32
    %7 = vector.broadcast %cst_5 : f32 to vector<16x64xf32>
    %8 = arith.mulf %7, %6 : vector<16x64xf32>
    %9 = math.tanh %8 : vector<16x64xf32>
    %cst_6 = arith.constant 1.000000e+00 : f32
    %10 = vector.broadcast %cst_6 : f32 to vector<16x64xf32>
    %11 = arith.addf %10, %9 : vector<16x64xf32>
    %cst_7 = arith.constant 5.000000e-01 : f32
    %12 = vector.broadcast %cst_7 : f32 to vector<16x64xf32>
    %13 = arith.mulf %12, %11 : vector<16x64xf32>
    %14 = arith.truncf %13 : vector<16x64xf32> to vector<16x64xbf16>
    %c0_8 = arith.constant 0 : index
    %c0_9 = arith.constant 0 : index
    %15 = vector.load %arg5[%c0_8, %c0_9] : memref<16x64xbf16, #tpu.memory_space<vmem>>, vector<16x64xbf16>
    tpu.vector_store %arg5[%c0_8, %c0_9], %14 {strides = array<i32>} : memref<16x64xbf16, #tpu.memory_space<vmem>>, vector<16x64xbf16>,
    return
  }
  func.func @transform_0(%arg0: i32, %arg1: i32) -> (i32, i32) {
    %c0_i32 = arith.constant 0 : i32
    %c0_i32_0 = arith.constant 0 : i32
    return %arg0, %c0_i32 : i32, i32
  }
  func.func @transform_1(%arg0: i32, %arg1: i32) -> (i32, i32) {
    %c0_i32 = arith.constant 0 : i32
    %c0_i32_0 = arith.constant 0 : i32
    return %c0_i32, %arg1 : i32, i32
  }
  func.func @transform_2(%arg0: i32, %arg1: i32) -> (i32, i32) {
    %c0_i32 = arith.constant 0 : i32
    %c0_i32_0 = arith.constant 0 : i32
    return %c0_i32, %arg1 : i32, i32
  }
  func.func @transform_3(%arg0: i32, %arg1: i32) -> (i32, i32) {
    %c0_i32 = arith.constant 0 : i32
    return %arg0, %arg1 : i32, i32
  }
}

</mosaic_0001>

<llo_original>
// kernel: ffn_forward.1
$region0: #{ffn_forward.1}
  #allocation0 [shape = 'u32[]', space=smem, size = 0x4, offset = 0x4, fixed_abs, tag = 'smem constant byte address 0x4 - core index']
  #allocation1 [shape = 'u32[72,128]{1,0:T(1,128)}', space=vmem, size = 0x9000, scoped, tag = 'internal scratch']
  %s0 = inlined_call_operand.hbm [shape: f32[16,32], index: 0, kind: input, shape index: {}]
  %s1 = inlined_call_operand.hbm [shape: bf16[32,64], index: 1, kind: input, shape index: {}]
  %s2 = inlined_call_operand.vmem [shape: f32[1,64], index: 2, kind: input, shape index: {}]
  %s3 = inlined_call_operand.hbm [shape: bf16[16,64], index: 3, kind: output, shape index: {}]
  %s4 = sld [smem:[#allocation0]]
  $region30: #{ffn_forward.1} parent=0
    _
  %s6 = ssub.s32 1, %s4
  %s7 = scalar_select 0, %s6, %s4
  $region1: #{ffn_forward.1} parent=0
    #allocation2 [shape = 'u8[8192]{0}', space=vmem, size = 0x2000, scoped, tag = 'input window, operand 0, single buffered']
    #allocation3 [shape = 's32[1]{0}', space=sflag, size = 0x4, scoped, tag = 'scoped memory for ffn_forward.1']
    #allocation4 [shape = 's32[1]{0}', space=sflag, size = 0x4, scoped, tag = 'scoped memory for ffn_forward.1']
    #allocation5 [shape = 'u8[8192]{0}', space=vmem, size = 0x2000, scoped, tag = 'input window, operand 1, single buffered']
    #allocation6 [shape = 's32[1]{0}', space=sflag, size = 0x4, scoped, tag = 'scoped memory for ffn_forward.1']
    #allocation7 [shape = 'u8[4096]{0}', space=vmem, size = 0x1000, scoped, tag = 'output window, operand 0, single buffered']
    %8 = vsyncpa [#allocation3], 0
    %9 = vsyncpa [#allocation6], 0
    %10 = vsyncpa [#allocation4], 0
    // Predicated region
    $region2: #{ffn_forward.1} parent=1 // pred_check
      _
    $region3: #{ffn_forward.1} parent=1 // pred_check_branch
      %12 = sbr.rel (0) target = $region5
    $region4: #{ffn_forward.1} parent=1 // pred_region
      %14 = vsyncadd [#allocation3], 0
      %s15 = sshll.u32 %s0, 4
      %s16 = int_to_ptr.hbm [resolvable:$true] %s15
      %s17 = sshll.u32 [#allocation2], 4
      %s18 = int_to_ptr.vmem [resolvable:$true] %s17
      %23 = dma.hbm_to_vmem [thread:$0]  %s16, 256, %s18, [#allocation3], 128, 128, 8
    $region5: #{ffn_forward.1} parent=1 // pred_fallthru
      _
    // Predicated region
    $region6: #{ffn_forward.1} parent=1 // pred_check
      _
    $region7: #{ffn_forward.1} parent=1 // pred_check_branch
      %25 = sbr.rel (0) target = $region9
    $region8: #{ffn_forward.1} parent=1 // pred_region
      %27 = vsyncadd [#allocation6], 0
      %s28 = sshll.u32 %s1, 4
      %s29 = int_to_ptr.hbm [resolvable:$true] %s28
      %s30 = sshll.u32 [#allocation5], 4
      %s31 = int_to_ptr.vmem [resolvable:$true] %s30
      %36 = dma.hbm_to_vmem [thread:$0]  %s29, 256, %s31, [#allocation6], 64, 64, 4
    $region9: #{ffn_forward.1} parent=1 // pred_fallthru
      _
    // Predicated region
    $region10: #{ffn_forward.1} parent=1 // pred_check
      _
    $region11: #{ffn_forward.1} parent=1 // pred_check_branch
      %38 = sbr.rel (0) target = $region13
    $region12: #{ffn_forward.1} parent=1 // pred_region
      _
    $region13: #{ffn_forward.1} parent=1 // pred_fallthru
      _
    // Predicated region
    $region14: #{ffn_forward.1} parent=1 // pred_check
      _
    $region15: #{ffn_forward.1} parent=1 // pred_check_branch
      %40 = sbr.rel (0) target = $region17
    $region16: #{ffn_forward.1} parent=1 // pred_region
      %42 = dma.done [#allocation3], 256
    $region17: #{ffn_forward.1} parent=1 // pred_fallthru
      _
    // Predicated region
    $region18: #{ffn_forward.1} parent=1 // pred_check
      _
    $region19: #{ffn_forward.1} parent=1 // pred_check_branch
      %44 = sbr.rel (0) target = $region21
    $region20: #{ffn_forward.1} parent=1 // pred_region
      %46 = dma.done [#allocation6], 256
    $region21: #{ffn_forward.1} parent=1 // pred_fallthru
      _
    %v48 = vld [vmem:[#allocation2] sm:$0xff]
    %v49 = vld [vmem:[#allocation2 + $0x8] sm:$0xff]
    %v50 = vpack.c.bf16 %v49, %v48
    %v51 = vld [vmem:[#allocation5] sm:$0xf]
    %v52 = vld [vmem:[#allocation5 + $0x4] sm:$0xf]
    %v53 = vld [vmem:[#allocation5 + $0x8] sm:$0xf]
    %v54 = vld [vmem:[#allocation5 + $0xc] sm:$0xf]
    %v55 = vld [vmem:[%s2] sm:$0x1]
    %v57 = vperm.slane %v55, 0
    %v63 = vunpack.c.l.b16 %v51
    %v64 = vunpack.c.l.b16 %v52
    %v65 = vunpack.c.l.b16 %v53
    %v66 = vunpack.c.l.b16 %v54
    %v67 = vpack.c.b16 %v64, %v63
    %v68 = vpack.c.b16 %v66, %v65
    %vm71 = vcmask 261120
    %v73 = vsel %vm71, %v50, 0
    %75 = vmatpush.bf16.msra.mxu0 0
    %76 = vmatpush.bf16.msra.mxu0 0
    %77 = vmatpush.bf16.msra.mxu0 0
    %78 = vmatpush.bf16.msra.mxu0 0
    %79 = vmatpush.bf16.msra.mxu0 0
    %80 = vmatpush.bf16.msra.mxu0 0
    %81 = vmatpush.bf16.msra.mxu0 %v68
    %82 = vmatpush.bf16.msra.mxu0 %v67
    %83 = vmatmul.bf16.gmra.mxu0 %v73
    %v84 = vpop.f32.mrf.mxu0
    %v85 = vadd.f32 %v57, %v84
    %v86 = vpop.f32.mrf.mxu0
    %v87 = vadd.f32 %v57, %v86
    %88 = vdwg.mxu0
    %v89 = vmul.f32 %v85, 0.5
    %v90 = vmul.f32 %v87, 0.5
    %v91 = vtanh.pop %v89
    %v92 = vtanh.pop %v90
    %v93 = vadd.f32 %v91, 1.0
    %v94 = vadd.f32 %v92, 1.0
    %v95 = vmul.f32 %v93, 0.5
    %v96 = vmul.f32 %v94, 0.5
    %v97 = vpack.c.bf16 %v95, %v95
    %v98 = vpack.c.bf16 %v96, %v96
    %vm99 = vcmask 519168
    %100 = vst.msk [vmem:[#allocation7] sm:$0xf] %vm99, %v97
    %101 = vst.msk [vmem:[#allocation7 + $0x4] sm:$0xf] %vm99, %v98
    // Predicated region
    $region22: #{ffn_forward.1} parent=1 // pred_check
      _
    $region23: #{ffn_forward.1} parent=1 // pred_check_branch
      %103 = sbr.rel (0) target = $region25
    $region24: #{ffn_forward.1} parent=1 // pred_region
      %105 = vsyncadd [#allocation4], 0
      %s106 = sshll.u32 [#allocation7], 4
      %s107 = int_to_ptr.vmem [resolvable:$true] %s106
      %s108 = sshll.u32 %s3, 4
      %s109 = int_to_ptr.hbm [resolvable:$true] %s108
      %114 = dma.vmem_to_hbm [thread:$0]  %s107, 128, %s109, [#allocation4], 64, 64, 4
    $region25: #{ffn_forward.1} parent=1 // pred_fallthru
      _
    // Predicated region
    $region26: #{ffn_forward.1} parent=1 // pred_check
      _
    $region27: #{ffn_forward.1} parent=1 // pred_check_branch
      %116 = sbr.rel (0) target = $region29
    $region28: #{ffn_forward.1} parent=1 // pred_region
      %118 = dma.done [#allocation4], 128
    $region29: #{ffn_forward.1} parent=1 // pred_fallthru
      _
    %119 = vsyncpa [#allocation3], 1
    %120 = vsyncpa [#allocation6], 1
    %121 = vsyncpa [#allocation4], 1

</llo_original>
